<compile_context>
chip_gen: v7x
topology: tpu7x:2x2x1
jax: 0.10.0
libtpu: 0.0.40
codegen_flags: <defaults>
</compile_context>

<pallas_src>
import functools

import jax
import jax.numpy as jnp
from jax.experimental import pallas as pl
from jax.experimental.pallas import tpu as pltpu

# ---------------- model hyper-params (synthetic, deterministic) -------------
B, H, DX = 2, 8, 16           # batch, horizon, transition dim
CDIM = 4                      # conditioning dim
TDIM = 8                      # sinusoidal time-embedding dim
DIN = DX + CDIM + TDIM        # per-step MLP input dim (28)
HID = 32                      # hidden width (multiple of the 8-row sublane tile)
LANE = 128                    # TPU lane width
TILE_H_MAX = 2048             # horizon rows (lanes) per grid step


def _round_up(n, m):
    return ((n + m - 1) // m) * m


def _pick_tile(hp, min_tiles=1):
    """Largest multiple-of-LANE divisor of hp that is <= TILE_H_MAX and leaves
    at least `min_tiles` horizon tiles (hp is already a multiple of LANE)."""
    n = hp // LANE
    best = 1
    for k in range(1, n + 1):
        if n % k == 0 and k * LANE <= TILE_H_MAX and (n // k) >= min_tiles:
            best = k
    return best * LANE


# ------------------------------- Pallas kernel ------------------------------
def _cbf_guide_kernel(xT_ref, ctx_ref, w1xT_ref, w2row_ref, b2_ref, o_ref):
    # xT_ref    : (1, DX, TILE)   horizon on lanes (f32 or bf16)
    # ctx_ref   : (1, HID, 1)     per-batch W1c^T cond + W1t^T temb + b1 (f32)
    # w1xT_ref  : (HID, DX)       layer-1 weights, x rows only
    # w2row_ref : (1, HID)        layer-2 weights as a row (f32)
    # b2_ref    : (1, 1)          layer-2 bias
    # o_ref     : (1, 1, TILE)    lane-dense f32 output slab
    xT = xT_ref[0]                                            # (DX, TILE)

    # Layer 1 on the MXU (f32 accumulate even for bf16 inputs), fused context
    # add + ReLU on the VPU.
    h = jnp.dot(w1xT_ref[...], xT,
                preferred_element_type=jnp.float32)           # (HID, TILE)
    h = jnp.maximum(h + ctx_ref[0], 0.0)                      # (HID, TILE)

    # Layer 2 (DOUT = 1) on the MXU: keeps the result lane-dense.
    o = jnp.dot(w2row_ref[...], h,
                preferred_element_type=jnp.float32)           # (1, TILE)
    o_ref[0] = (o + b2_ref[...]).astype(o_ref.dtype)


def guide_mlp(xT, ctx, kp, *, tile):
    b, dx, hp = xT.shape
    hid = ctx.shape[1]
    grid = (b, hp // tile)
    return pl.pallas_call(
        _cbf_guide_kernel,
        out_shape=jax.ShapeDtypeStruct((b, 1, hp), jnp.float32),
        grid=grid,
        in_specs=[
            pl.BlockSpec((1, dx, tile), lambda bi, j: (bi, 0, j)),
            pl.BlockSpec((1, hid, 1), lambda bi, j: (bi, 0, 0)),
            pl.BlockSpec((hid, dx), lambda bi, j: (0, 0)),
            pl.BlockSpec((1, hid), lambda bi, j: (0, 0)),
            pl.BlockSpec((1, 1), lambda bi, j: (0, 0)),
        ],
        out_specs=pl.BlockSpec((1, 1, tile), lambda bi, j: (bi, 0, j)),
        compiler_params=pltpu.CompilerParams(
            dimension_semantics=("parallel", "parallel")),
    )(xT, ctx, kp["w1xT"], kp["w2row"], kp["b2"])


# ------------------------------- glue (plain JAX) ---------------------------
def time_embedding(t, dim):
    half = dim // 2
    freqs = jnp.exp(-jnp.log(10000.0) * jnp.arange(half, dtype=jnp.float32) / half)
    ang = t.astype(jnp.float32)[:, None] * freqs[None, :]
    return jnp.concatenate([jnp.sin(ang), jnp.cos(ang)], axis=-1)  # (B, dim)


def init_params(key):
    k1, k2, k3, k4 = jax.random.split(key, 4)
    w1 = jax.random.normal(k1, (DIN, HID), jnp.float32) / jnp.sqrt(DIN)
    b1 = jax.random.normal(k2, (HID,), jnp.float32) * 0.01
    w2 = jax.random.normal(k3, (HID,), jnp.float32) / jnp.sqrt(HID)
    b2 = jax.random.normal(k4, (), jnp.float32) * 0.01
    return dict(w1=w1, b1=b1, w2=w2, b2=b2)


def pack_params(params, compute_dtype=jnp.float32):
    """Split W1 row-wise. Only the x-rows of W1 (and x itself) are fed to the
    MXU in `compute_dtype` (f32 or bf16); cond/temb context and layer 2 stay
    f32. No HID padding — 32 is already sublane-tile aligned."""
    w1, b1, w2, b2 = params["w1"], params["b1"], params["w2"], params["b2"]
    w1x, w1c, w1t = w1[:DX], w1[DX:DX + CDIM], w1[DX + CDIM:]
    return dict(
        w1xT=w1x.T.astype(compute_dtype),        # (HID, DX)
        w1c=w1c, w1t=w1t, b1=b1,                 # f32, used for wrapper ctx
        w2row=w2.reshape(1, HID),                # (1, HID) f32
        b2=b2.reshape(1, 1),                     # (1, 1)  f32
    )


@jax.jit
def cbf_guide_forward(kparams, x, cond, t):
    """Equivalent of CbfGuide.forward: model(x, cond, t).squeeze(dim=-1)."""
    b, h, dx = x.shape
    temb = time_embedding(t, TDIM)                                   # (B, TDIM)

    # Per-batch context hoisted out of the kernel (tiny: B x HID).
    ctx = cond @ kparams["w1c"] + temb @ kparams["w1t"] + kparams["b1"]
    ctx = ctx[:, :, None]                                            # (B, HID, 1)

    # Pad the horizon only to the 128-lane boundary; pick a tile that divides
    # it exactly (>=2 tiles when B == 1 so both v7x TensorCores get work).
    hp = _round_up(h, LANE)
    min_tiles = 2 if (b == 1 and hp >= 2 * LANE) else 1
    tile = _pick_tile(hp, min_tiles)

    # Single fused relayout pass over x: pad + (optional bf16 cast) + transpose
    # to horizon-on-lanes. x is rewritten once, not twice.
    x_dt = kparams["w1xT"].dtype
    xT = jnp.transpose(
        jnp.pad(x, ((0, 0), (0, hp - h), (0, 0))).astype(x_dt), (0, 2, 1))

    out = guide_mlp(xT, ctx, kparams, tile=tile)                     # (B, 1, hp)
    return out[:, 0, :h]                                             # (B, H)

# TODO(synk): CbfGuide.gradients() relies on torch.autograd.grad through the
# wrapped model (log_softmax over class pairs); it is not part of the forward
# pass and is left to jax.grad at the caller level rather than faked here.


if __name__ == "__main__":
    key = jax.random.PRNGKey(0)
    kx, kc, kt, kp = jax.random.split(key, 4)
    x = jax.random.normal(kx, (B, H, DX), jnp.float32)
    cond = jax.random.normal(kc, (B, CDIM), jnp.float32)
    t = jax.random.randint(kt, (B,), 0, 100)
    params = init_params(kp)

    # pure-JAX reference of the same synthetic model (unsplit W1)
    temb = time_embedding(t, TDIM)
    feat = jnp.concatenate(
        [x,
         jnp.broadcast_to(cond[:, None, :], (B, H, CDIM)),
         jnp.broadcast_to(temb[:, None, :], (B, H, TDIM))], axis=-1)
    hidden = jnp.maximum(
        jnp.einsum("bhd,dk->bhk", feat, params["w1"],
                   precision=jax.lax.Precision.HIGHEST) + params["b1"], 0.0)
    ref = jnp.einsum("bhk,k->bh", hidden, params["w2"],
                     precision=jax.lax.Precision.HIGHEST) + params["b2"]

    # f32 path: exact-parity check.
    y = cbf_guide_forward(pack_params(params), x, cond, t)
    y = jax.block_until_ready(y)
    assert y.shape == (B, H) and y.dtype == jnp.float32
    assert jnp.allclose(y, ref, atol=1e-4, rtol=1e-4), (
        float(jnp.max(jnp.abs(y - ref))))

    # bf16 x / W1x path (halves the dominant HBM read on v6e/v7x); f32
    # accumulation keeps the error at bf16-input level.
    y16 = cbf_guide_forward(pack_params(params, compute_dtype=jnp.bfloat16),
                            x, cond, t)
    y16 = jax.block_until_ready(y16)
    assert jnp.allclose(y16, ref, atol=5e-2, rtol=5e-2), (
        float(jnp.max(jnp.abs(y16 - ref))))

    print("KERNEL_OK")
</pallas_src>

<mosaic_0001>
module attributes {stable_mosaic.version = 11 : i64} {
  func.func @_cbf_guide_kernel(%arg0: i32, %arg1: i32, %arg2: memref<1x16x128xf32, #tpu.memory_space<vmem>>, %arg3: memref<1x32x1xf32, #tpu.memory_space<vmem>>, %arg4: memref<32x16xf32, #tpu.memory_space<vmem>>, %arg5: memref<1x32xf32, #tpu.memory_space<vmem>>, %arg6: memref<1x1xf32, #tpu.memory_space<vmem>>, %arg7: memref<1x1x128xf32, #tpu.memory_space<vmem>>) attributes {dimension_semantics = [#tpu.dimension_semantics<parallel>, #tpu.dimension_semantics<parallel>], iteration_bounds = array<i64: 2, 1>, scalar_prefetch = 0 : i64, scratch_operands = 0 : i64, tpu.core_type = #tpu.core_type<tc>, window_params = [{transform_indices = @transform_0, window_bounds = array<i64: 1, 16, 128>}, {transform_indices = @transform_1, window_bounds = array<i64: 1, 32, 1>}, {pipeline_mode = #tpu.pipeline_mode<synchronous>, transform_indices = @transform_2, window_bounds = array<i64: 32, 16>}, {pipeline_mode = #tpu.pipeline_mode<synchronous>, transform_indices = @transform_3, window_bounds = array<i64: 1, 32>}, {pipeline_mode = #tpu.pipeline_mode<synchronous>, transform_indices = @transform_4, window_bounds = array<i64: 1, 1>}, {transform_indices = @transform_5, window_bounds = array<i64: 1, 1, 128>}]} {
    %c0 = arith.constant 0 : index
    %c0_0 = arith.constant 0 : index
    %c0_1 = arith.constant 0 : index
    %0 = vector.load %arg2[%c0, %c0_0, %c0_1] : memref<1x16x128xf32, #tpu.memory_space<vmem>>, vector<1x16x128xf32>
    %1 = vector.shape_cast %0 : vector<1x16x128xf32> to vector<16x128xf32>
    %c0_2 = arith.constant 0 : index
    %c0_3 = arith.constant 0 : index
    %2 = vector.load %arg4[%c0_2, %c0_3] : memref<32x16xf32, #tpu.memory_space<vmem>>, vector<32x16xf32>
    %cst = arith.constant dense<0.000000e+00> : vector<32x128xf32>
    %3 = tpu.matmul %2, %1, %cst {dimension_numbers = #tpu.dot_dimension_numbers<[1], [0], [0], [1], [0, 0, 1, 1], [], []>} : vector<32x16xf32>, vector<16x128xf32>, vector<32x128xf32> -> vector<32x128xf32>
    %c0_4 = arith.constant 0 : index
    %c0_5 = arith.constant 0 : index
    %c0_6 = arith.constant 0 : index
    %4 = vector.load %arg3[%c0_4, %c0_5, %c0_6] : memref<1x32x1xf32, #tpu.memory_space<vmem>>, vector<1x32x1xf32>
    %5 = vector.shape_cast %4 : vector<1x32x1xf32> to vector<32x1xf32>
    %6 = vector.broadcast %5 : vector<32x1xf32> to vector<32x128xf32>
    %7 = arith.addf %3, %6 : vector<32x128xf32>
    %cst_7 = arith.constant 0.000000e+00 : f32
    %8 = vector.broadcast %cst_7 : f32 to vector<32x128xf32>
    %9 = arith.maximumf %7, %8 : vector<32x128xf32>
    %c0_8 = arith.constant 0 : index
    %c0_9 = arith.constant 0 : index
    %10 = vector.load %arg5[%c0_8, %c0_9] : memref<1x32xf32, #tpu.memory_space<vmem>>, vector<1x32xf32>
    %cst_10 = arith.constant dense<0.000000e+00> : vector<1x128xf32>
    %11 = tpu.matmul %10, %9, %cst_10 {dimension_numbers = #tpu.dot_dimension_numbers<[1], [0], [0], [1], [0, 0, 1, 1], [], []>} : vector<1x32xf32>, vector<32x128xf32>, vector<1x128xf32> -> vector<1x128xf32>
    %c0_11 = arith.constant 0 : index
    %c0_12 = arith.constant 0 : index
    %12 = vector.load %arg6[%c0_11, %c0_12] : memref<1x1xf32, #tpu.memory_space<vmem>>, vector<1x1xf32>
    %13 = vector.broadcast %12 : vector<1x1xf32> to vector<1x128xf32>
    %14 = arith.addf %11, %13 : vector<1x128xf32>
    %c0_13 = arith.constant 0 : index
    %c0_14 = arith.constant 0 : index
    %c0_15 = arith.constant 0 : index
    %15 = vector.load %arg7[%c0_13, %c0_14, %c0_15] : memref<1x1x128xf32, #tpu.memory_space<vmem>>, vector<1x1x128xf32>
    %16 = vector.shape_cast %15 : vector<1x1x128xf32> to vector<1x128xf32>
    %17 = vector.shape_cast %14 : vector<1x128xf32> to vector<1x1x128xf32>
    tpu.vector_store %arg7[%c0_13, %c0_14, %c0_15], %17 {strides = array<i32>} : memref<1x1x128xf32, #tpu.memory_space<vmem>>, vector<1x1x128xf32>,
    return
  }
  func.func @transform_0(%arg0: i32, %arg1: i32) -> (i32, i32, i32) {
    %c0_i32 = arith.constant 0 : i32
    %c0_i32_0 = arith.constant 0 : i32
    return %arg0, %c0_i32, %arg1 : i32, i32, i32
  }
  func.func @transform_1(%arg0: i32, %arg1: i32) -> (i32, i32, i32) {
    %c0_i32 = arith.constant 0 : i32
    %c0_i32_0 = arith.constant 0 : i32
    %c0_i32_1 = arith.constant 0 : i32
    return %arg0, %c0_i32, %c0_i32_0 : i32, i32, i32
  }
  func.func @transform_2(%arg0: i32, %arg1: i32) -> (i32, i32) {
    %c0_i32 = arith.constant 0 : i32
    %c0_i32_0 = arith.constant 0 : i32
    %c0_i32_1 = arith.constant 0 : i32
    return %c0_i32, %c0_i32_0 : i32, i32
  }
  func.func @transform_3(%arg0: i32, %arg1: i32) -> (i32, i32) {
    %c0_i32 = arith.constant 0 : i32
    %c0_i32_0 = arith.constant 0 : i32
    %c0_i32_1 = arith.constant 0 : i32
    return %c0_i32, %c0_i32_0 : i32, i32
  }
  func.func @transform_4(%arg0: i32, %arg1: i32) -> (i32, i32) {
    %c0_i32 = arith.constant 0 : i32
    %c0_i32_0 = arith.constant 0 : i32
    %c0_i32_1 = arith.constant 0 : i32
    return %c0_i32, %c0_i32_0 : i32, i32
  }
  func.func @transform_5(%arg0: i32, %arg1: i32) -> (i32, i32, i32) {
    %c0_i32 = arith.constant 0 : i32
    %c0_i32_0 = arith.constant 0 : i32
    return %arg0, %c0_i32, %arg1 : i32, i32, i32
  }
}

</mosaic_0001>

<llo_original>
// kernel: cbf_guide_forward.1
$region0: #{cbf_guide_forward.1}
  #allocation0 [shape = 'u32[]', space=smem, size = 0x4, offset = 0x4, fixed_abs, tag = 'smem constant byte address 0x4 - core index']
  #allocation1 [shape = 'u32[144,128]{1,0:T(1,128)}', space=vmem, size = 0x12000, scoped, tag = 'internal scratch']
  #allocation2 [shape = 'f32[1,1]{1,0:T(1,128)S(1)}', space=vmem, size = 0x200, scoped, tag = 'scoped memory for cbf_guide_forward.1']
  %s0 = inlined_call_operand.vmem [shape: f32[2,16,128], index: 0, kind: input, shape index: {}]
  %s1 = inlined_call_operand.vmem [shape: f32[2,32,1], index: 1, kind: input, shape index: {}]
  %s2 = inlined_call_operand.vmem [shape: f32[32,16], index: 2, kind: input, shape index: {}]
  %s3 = inlined_call_operand.vmem [shape: f32[1,32], index: 3, kind: input, shape index: {}]
  %s4 = inlined_call_operand.<no memory space> [shape: f32[1,1], index: 4, kind: input, shape index: {}]
  %s5 = inlined_call_operand.hbm [shape: f32[2,1,128], index: 5, kind: output, shape index: {}]
  %s6 = sld [smem:[#allocation0]]
  $region53: #{cbf_guide_forward.1} parent=0
    _
  %s8 = ssub.s32 1, %s6
  %s9 = scalar_select 0, %s8, %s6
  %v10 = vstv %s4
  %11 = vst [vmem:[#allocation2] sm:$0x1] %v10
  $region1: #{cbf_guide_forward.1} parent=0
    #allocation3 [shape = 'u8[1024]{0}', space=vmem, size = 0x400, scoped, tag = 'output window, operand 0']
    #allocation4 [shape = 's32[2]{0}', space=sflag, size = 0x8, scoped, tag = 'scoped memory for cbf_guide_forward.1']
    %12 = vsyncpa [#allocation4], 0
    %s13 = scalar_lea.sflag [#allocation4], 1
    %14 = vsyncpa %s13, 0
    loop: start=0, step=1, limit=4
    $region2: #{cbf_guide_forward.1} parent=1 // loop_pre_header
      _
    $region3: #{cbf_guide_forward.1} parent=1 // loop_header
      %s16 = sphi 0, %s20
      %p17 = scmp.ge.s32.totalorder %s16, 4
      %s23 = sphi 0, %s35
      %s24 = sphi 0, %s31
      %s25 = sphi 0, %s23
      %s26 = sphi 0, %s24
      %s27 = sphi 0, %s25
      %s28 = sphi 0, %s26
      %s40 = sphi 0, %s42
      %s43 = sphi 0, %s40
      %s44 = sphi 0, %s43
      %s60 = sphi 0, %s44
      %s66 = sphi 0, %s68
      %s69 = sphi 0, %s66
      %s70 = sphi 0, %s69
      %s86 = sphi 0, %s70
      %s90 = sphi 0, %s90
      %s92 = sphi 0, %s90
      %s93 = sphi 0, %s92
      %s107 = sphi 0, %s93
      %s111 = sphi 0, %s111
      %s113 = sphi 0, %s111
      %s114 = sphi 0, %s113
      %s128 = sphi 0, %s114
      %s132 = sphi 0, %s132
      %s134 = sphi 0, %s132
      %s135 = sphi 0, %s134
      %s149 = sphi 0, %s135
      %s157 = sphi 0, %s159
      %s160 = sphi 0, %s157
      %s161 = sphi 0, %s160
      %s177 = sphi 0, %s161
    $region4: #{cbf_guide_forward.1} parent=1 // loop_header_branch
      %19 = sbr.rel (%p17) target = $region8
    $region5: #{cbf_guide_forward.1} parent=1 // loop_body
      %s21 = ssub.s32 %s16, 1
      %s22 = ssub.s32 %s16, 2
      %s29 = sadd.s32 1, %s24
      %p30 = scmp.ge.s32.totalorder %s29, 1
      %s31 = scalar_select %p30, 0, %s29
      %s32 = sadd.s32 1, %s23
      %s33 = scalar_select %p30, %s32, %s23
      %p34 = scmp.ge.s32.totalorder %s33, 2
      %s35 = scalar_select %p34, 0, %s33
      %s36 = ssub.s32 %s23, %s35
      %s37 = ssub.s32 %s24, %s31
      %s38 = sor.u32 %s36, %s37
      %p39 = scmp.eq.s32.totalorder %s38, 0
      %s41 = sadd.s32 %s40, 1
      %s42 = scalar_select %p39, %s40, %s41
      %p45 = pneg %p39
      %p46 = scmp.eq.s32.totalorder %s16, 1
      %p47 = por %p45, %p46
      %p48 = scmp.ne.s32.totalorder %s40, %s43
      %p49 = scmp.eq.s32.totalorder %s16, 0
      %p50 = por %p48, %p49
      %p51 = scmp.ne.s32.totalorder %s40, %s43
      %p52 = scmp.eq.s32.totalorder %s21, 1
      %p53 = por %p51, %p52
      %p54 = scmp.ne.s32.totalorder %s43, %s44
      %p55 = scmp.eq.s32.totalorder %s21, 0
      %p56 = por %p54, %p55
      %p57 = scmp.ne.s32.totalorder %s43, %s44
      %p58 = scmp.eq.s32.totalorder %s22, 1
      %p59 = por %p57, %p58
      %p61 = scmp.ne.s32.totalorder %s44, %s60
      %p62 = scmp.eq.s32.totalorder %s22, 0
      %p63 = por %p61, %p62
      %s64 = ssub.s32 %s23, %s35
      %p65 = scmp.eq.s32.totalorder %s64, 0
      %s67 = sadd.s32 %s66, 1
      %s68 = scalar_select %p65, %s66, %s67
      %p71 = pneg %p65
      %p72 = scmp.eq.s32.totalorder %s16, 1
      %p73 = por %p71, %p72
      %p74 = scmp.ne.s32.totalorder %s66, %s69
      %p75 = scmp.eq.s32.totalorder %s16, 0
      %p76 = por %p74, %p75
      %p77 = scmp.ne.s32.totalorder %s66, %s69
      %p78 = scmp.eq.s32.totalorder %s21, 1
      %p79 = por %p77, %p78
      %p80 = scmp.ne.s32.totalorder %s69, %s70
      %p81 = scmp.eq.s32.totalorder %s21, 0
      %p82 = por %p80, %p81
      %p83 = scmp.ne.s32.totalorder %s69, %s70
      %p84 = scmp.eq.s32.totalorder %s22, 1
      %p85 = por %p83, %p84
      %p87 = scmp.ne.s32.totalorder %s70, %s86
      %p88 = scmp.eq.s32.totalorder %s22, 0
      %p89 = por %p87, %p88
      %s91 = sadd.s32 %s90, 1
      %p94 = scmp.eq.s32.totalorder %s16, 1
      %p95 = scmp.ne.s32.totalorder %s90, %s92
      %p96 = scmp.eq.s32.totalorder %s16, 0
      %p97 = por %p95, %p96
      %p98 = scmp.ne.s32.totalorder %s90, %s92
      %p99 = scmp.eq.s32.totalorder %s21, 1
      %p100 = por %p98, %p99
      %p101 = scmp.ne.s32.totalorder %s92, %s93
      %p102 = scmp.eq.s32.totalorder %s21, 0
      %p103 = por %p101, %p102
      %p104 = scmp.ne.s32.totalorder %s92, %s93
      %p105 = scmp.eq.s32.totalorder %s22, 1
      %p106 = por %p104, %p105
      %p108 = scmp.ne.s32.totalorder %s93, %s107
      %p109 = scmp.eq.s32.totalorder %s22, 0
      %p110 = por %p108, %p109
      %s112 = sadd.s32 %s111, 1
      %p115 = scmp.eq.s32.totalorder %s16, 1
      %p116 = scmp.ne.s32.totalorder %s111, %s113
      %p117 = scmp.eq.s32.totalorder %s16, 0
      %p118 = por %p116, %p117
      %p119 = scmp.ne.s32.totalorder %s111, %s113
      %p120 = scmp.eq.s32.totalorder %s21, 1
      %p121 = por %p119, %p120
      %p122 = scmp.ne.s32.totalorder %s113, %s114
      %p123 = scmp.eq.s32.totalorder %s21, 0
      %p124 = por %p122, %p123
      %p125 = scmp.ne.s32.totalorder %s113, %s114
      %p126 = scmp.eq.s32.totalorder %s22, 1
      %p127 = por %p125, %p126
      %p129 = scmp.ne.s32.totalorder %s114, %s128
      %p130 = scmp.eq.s32.totalorder %s22, 0
      %p131 = por %p129, %p130
      %s133 = sadd.s32 %s132, 1
      %p136 = scmp.eq.s32.totalorder %s16, 1
      %p137 = scmp.ne.s32.totalorder %s132, %s134
      %p138 = scmp.eq.s32.totalorder %s16, 0
      %p139 = por %p137, %p138
      %p140 = scmp.ne.s32.totalorder %s132, %s134
      %p141 = scmp.eq.s32.totalorder %s21, 1
      %p142 = por %p140, %p141
      %p143 = scmp.ne.s32.totalorder %s134, %s135
      %p144 = scmp.eq.s32.totalorder %s21, 0
      %p145 = por %p143, %p144
      %p146 = scmp.ne.s32.totalorder %s134, %s135
      %p147 = scmp.eq.s32.totalorder %s22, 1
      %p148 = por %p146, %p147
      %p150 = scmp.ne.s32.totalorder %s135, %s149
      %p151 = scmp.eq.s32.totalorder %s22, 0
      %p152 = por %p150, %p151
      %s153 = ssub.s32 %s23, %s35
      %s154 = ssub.s32 %s24, %s31
      %s155 = sor.u32 %s153, %s154
      %p156 = scmp.eq.s32.totalorder %s155, 0
      %s158 = sadd.s32 %s157, 1
      %s159 = scalar_select %p156, %s157, %s158
      %p162 = pneg %p156
      %p163 = scmp.eq.s32.totalorder %s16, 1
      %p164 = por %p162, %p163
      %p165 = scmp.ne.s32.totalorder %s157, %s160
      %p166 = scmp.eq.s32.totalorder %s16, 0
      %p167 = por %p165, %p166
      %p168 = scmp.ne.s32.totalorder %s157, %s160
      %p169 = scmp.eq.s32.totalorder %s21, 1
      %p170 = por %p168, %p169
      %p171 = scmp.ne.s32.totalorder %s160, %s161
      %p172 = scmp.eq.s32.totalorder %s21, 0
      %p173 = por %p171, %p172
      %p174 = scmp.ne.s32.totalorder %s160, %s161
      %p175 = scmp.eq.s32.totalorder %s22, 1
      %p176 = por %p174, %p175
      %p178 = scmp.ne.s32.totalorder %s161, %s177
      %p179 = scmp.eq.s32.totalorder %s22, 0
      %p180 = por %p178, %p179
      %p181 = scmp.le.s32.totalorder 1, %s16
      %p182 = scmp.lt.s32.totalorder %s16, 3
      %p183 = pnand %p181, %p182
      %p184 = pneg %p183
      // Predicated region
      $region9: #{cbf_guide_forward.1} parent=5 // pred_check
        _
      $region10: #{cbf_guide_forward.1} parent=5 // pred_check_branch
        %186 = sbr.rel (%p183) target = $region12
      $region11: #{cbf_guide_forward.1} parent=5 // pred_region
        %s187 = ssub.s32 %s16, 1
        // Predicated region
        $region13: #{cbf_guide_forward.1} parent=11 // pred_check
          %p188 = pneg %p103
        $region14: #{cbf_guide_forward.1} parent=11 // pred_check_branch
          %190 = sbr.rel (%p188) target = $region16
        $region15: #{cbf_guide_forward.1} parent=11 // pred_region
          _
        $region16: #{cbf_guide_forward.1} parent=11 // pred_fallthru
          _
        // Predicated region
        $region17: #{cbf_guide_forward.1} parent=11 // pred_check
          %p191 = pneg %p124
        $region18: #{cbf_guide_forward.1} parent=11 // pred_check_branch
          %193 = sbr.rel (%p191) target = $region20
        $region19: #{cbf_guide_forward.1} parent=11 // pred_region
          _
        $region20: #{cbf_guide_forward.1} parent=11 // pred_fallthru
          _
        // Predicated region
        $region21: #{cbf_guide_forward.1} parent=11 // pred_check
          %p194 = pneg %p145
        $region22: #{cbf_guide_forward.1} parent=11 // pred_check_branch
          %196 = sbr.rel (%p194) target = $region24
        $region23: #{cbf_guide_forward.1} parent=11 // pred_region
          _
        $region24: #{cbf_guide_forward.1} parent=11 // pred_fallthru
          _
      $region12: #{cbf_guide_forward.1} parent=5 // pred_fallthru
        _
      %p197 = scmp.lt.s32.totalorder %s16, 2
      // Predicated region
      $region25: #{cbf_guide_forward.1} parent=5 // pred_check
        %p198 = pneg %p197
      $region26: #{cbf_guide_forward.1} parent=5 // pred_check_branch
        %200 = sbr.rel (%p198) target = $region28
      $region27: #{cbf_guide_forward.1} parent=5 // pred_region
        // Predicated region
        $region29: #{cbf_guide_forward.1} parent=27 // pred_check
          %p201 = pneg %p50
        $region30: #{cbf_guide_forward.1} parent=27 // pred_check_branch
          %203 = sbr.rel (%p201) target = $region32
        $region31: #{cbf_guide_forward.1} parent=27 // pred_region
          %p204 = scmp.lt.s32.totalorder %s23, 1
          %s205 = scalar_select %p204, %s23, 1
          %p206 = scmp.lt.s32.totalorder %s24, 0
          %s207 = scalar_select %p206, %s24, 0
          %s208 = smul.addr %s205, 2
          %s209 = sadd.s32 %s207, %s208
          %s210 = smul.addr %s209, 8
          %s211 = scalar_lea.vmem %s0, %s210
        $region32: #{cbf_guide_forward.1} parent=27 // pred_fallthru
          _
        // Predicated region
        $region33: #{cbf_guide_forward.1} parent=27 // pred_check
          %p212 = pneg %p76
        $region34: #{cbf_guide_forward.1} parent=27 // pred_check_branch
          %214 = sbr.rel (%p212) target = $region36
        $region35: #{cbf_guide_forward.1} parent=27 // pred_region
          %p215 = scmp.lt.s32.totalorder %s23, 1
          %s216 = scalar_select %p215, %s23, 1
          %s217 = smul.addr %s216, 4
          %s218 = smul.addr %s217, 8
          %s219 = scalar_lea.vmem %s1, %s218
        $region36: #{cbf_guide_forward.1} parent=27 // pred_fallthru
          _
      $region28: #{cbf_guide_forward.1} parent=5 // pred_fallthru
        _
      %p220 = scmp.le.s32.totalorder 1, %s16
      %p221 = scmp.lt.s32.totalorder %s16, 3
      %p222 = pnand %p220, %p221
      %p223 = pneg %p222
      // Predicated region
      $region37: #{cbf_guide_forward.1} parent=5 // pred_check
        _
      $region38: #{cbf_guide_forward.1} parent=5 // pred_check_branch
        %225 = sbr.rel (%p222) target = $region40
      $region39: #{cbf_guide_forward.1} parent=5 // pred_region
        %s226 = ssub.s32 %s16, 1
        %p227 = scmp.lt.s32.totalorder %s25, 1
        %s228 = scalar_select %p227, %s25, 1
        %p229 = scmp.lt.s32.totalorder %s26, 0
        %s230 = scalar_select %p229, %s26, 0
        %s231 = smul.addr %s228, 2
        %s232 = sadd.s32 %s230, %s231
        %s233 = smul.addr %s232, 8
        %s234 = scalar_lea.vmem %s0, %s233
        %p235 = pneg %p56
        %p236 = pneg %p53
        %p237 = scmp.lt.s32.totalorder %s25, 1
        %s238 = scalar_select %p237, %s25, 1
        %s239 = smul.addr %s238, 4
        %s240 = smul.addr %s239, 8
        %s241 = scalar_lea.vmem %s1, %s240
        %p242 = pneg %p82
        %p243 = pneg %p79
        %p244 = pneg %p103
        %p245 = pneg %p100
        %p246 = pneg %p124
        %p247 = pneg %p121
        %p248 = pneg %p145
        %p249 = pneg %p142
        %p250 = pneg %p173
        %p251 = pneg %p170
        %s252 = sand.u32 %s160, 1
        %s253 = scalar_lea.sflag [#allocation4], %s252
        %s254 = sand.u32 %s160, 1
        %s255 = scalar_lea.vmem [#allocation3], %s254
        %p256 = scmp.lt.s32.totalorder %s25, 1
        %s257 = scalar_select %p256, %s25, 1
        %p258 = scmp.lt.s32.totalorder %s26, 0
        %s259 = scalar_select %p258, %s26, 0
        %s260 = smul.addr %s257, 2
        %s261 = sadd.s32 %s259, %s260
        %s262 = smul.addr %s261, 8
        %s263 = scalar_lea.vmem %s0, %s262
        %p264 = scmp.lt.s32.totalorder %s25, 1
        %s265 = scalar_select %p264, %s25, 1
        %s266 = smul.addr %s265, 4
        %s267 = smul.addr %s266, 8
        %s268 = scalar_lea.vmem %s1, %s267
        %v269 = vld [vmem:[%s263] sm:$0xff]
        %v270 = vld [vmem:[%s263 + $0x8] sm:$0xff]
        %v271 = vld [vmem:[%s2] sm:$0xff]
        %v272 = vld [vmem:[%s2 + $0x8] sm:$0xff]
        %v273 = vld [vmem:[%s2 + $0x10] sm:$0xff]
        %v274 = vld [vmem:[%s2 + $0x18] sm:$0xff]
        %v275 = vld [vmem:[%s268] sm:$0xff]
        %v276 = vld [vmem:[%s268 + $0x8] sm:$0xff]
        %v277 = vld [vmem:[%s268 + $0x10] sm:$0xff]
        %v278 = vld [vmem:[%s268 + $0x18] sm:$0xff]
        %280 = vset.pattern.permute.xlu0 0
        %281 = vperm.xlu0 %280, %v275
        %v282 = vpop.permute.xlu0 %281
        %285 = vset.pattern.permute.xlu0 0
        %286 = vperm.xlu0 %285, %v276
        %v287 = vpop.permute.xlu0 %286
        %290 = vset.pattern.permute.xlu0 0
        %291 = vperm.xlu0 %290, %v277
        %v292 = vpop.permute.xlu0 %291
        %295 = vset.pattern.permute.xlu0 0
        %296 = vperm.xlu0 %295, %v278
        %v297 = vpop.permute.xlu0 %296
        %vm299 = vcmask 130048
        %v301 = vsel %vm299, %v271, 0
        %v304 = vsel %vm299, %v272, 0
        %v307 = vsel %vm299, %v273, 0
        %v310 = vsel %vm299, %v274, 0
        %312 = vmatprep.subr.mxu0 0.0
        %313 = vmatpush1.msra.mxu0 %v269
        %314 = vmatprep.subr.mxu0 0.0
        %315 = vmatpush1.msra.mxu0 %v270
        %316 = vmatprep.subr.mxu0 0.0
        %317 = vmatpush1.msra.mxu0 0.0
        %318 = vmatprep.subr.mxu0 0.0
        %319 = vmatpush1.msra.mxu0 0.0
        %320 = vmatprep.subr.mxu0 0.0
        %321 = vmatpush1.msra.mxu0 0.0
        %322 = vmatprep.subr.mxu0 0.0
        %323 = vmatpush1.msra.mxu0 0.0
        %324 = vmatprep.subr.mxu0 0.0
        %325 = vmatpush1.msra.mxu0 0.0
        %326 = vmatprep.subr.mxu0 0.0
        %327 = vmatpush1.msra.mxu0 0.0
        %328 = vmatprep.subr.mxu0 0.0
        %329 = vmatpush1.msra.mxu0 0.0
        %330 = vmatprep.subr.mxu0 0.0
        %331 = vmatpush1.msra.mxu0 0.0
        %332 = vmatprep.subr.mxu0 0.0
        %333 = vmatpush1.msra.mxu0 0.0
        %334 = vmatprep.subr.mxu0 0.0
        %335 = vmatpush1.msra.mxu0 0.0
        %336 = vmatprep.subr.mxu0 0.0
        %337 = vmatpush1.msra.mxu0 0.0
        %338 = vmatprep.subr.mxu0 0.0
        %339 = vmatpush1.msra.mxu0 0.0
        %340 = vmatprep.subr.mxu0 0.0
        %341 = vmatpush1.msra.mxu0 0.0
        %342 = vmatprep.subr.mxu0 0.0
        %343 = vmatpush1.msra.mxu0 0.0
        %344 = vmatprep.subr.mxu0 0.0
        %345 = vmatpush1.msra.mxu0 0.0
        %346 = vmatprep.subr.mxu0 0.0
        %347 = vmatpush1.msra.mxu0 0.0
        %348 = vmatprep.subr.mxu0 0.0
        %349 = vmatpush1.msra.mxu0 0.0
        %350 = vmatprep.subr.mxu0 0.0
        %351 = vmatpush1.msra.mxu0 0.0
        %352 = vmatprep.subr.mxu0 0.0
        %353 = vmatpush1.msra.mxu0 0.0
        %354 = vmatprep.subr.mxu0 0.0
        %355 = vmatpush1.msra.mxu0 0.0
        %356 = vmatprep.subr.mxu0 0.0
        %357 = vmatpush1.msra.mxu0 0.0
        %358 = vmatprep.subr.mxu0 0.0
        %359 = vmatpush1.msra.mxu0 0.0
        %360 = vmatprep.subr.mxu0 0.0
        %361 = vmatpush1.msra.mxu0 0.0
        %362 = vmatprep.subr.mxu0 0.0
        %363 = vmatpush1.msra.mxu0 0.0
        %364 = vmatprep.subr.mxu0 0.0
        %365 = vmatpush1.msra.mxu0 0.0
        %366 = vmatprep.subr.mxu0 0.0
        %367 = vmatpush1.msra.mxu0 0.0
        %368 = vmatprep.subr.mxu0 0.0
        %369 = vmatpush1.msra.mxu0 0.0
        %370 = vmatprep.subr.mxu0 0.0
        %371 = vmatpush1.msra.mxu0 0.0
        %372 = vmatprep.subr.mxu0 0.0
        %373 = vmatpush1.msra.mxu0 0.0
        %374 = vmatprep.subr.mxu0 0.0
        %375 = vmatpush1.msra.mxu0 0.0
        %376 = vmatprep.mubr.f32.mxu0 0.0
        %377 = vmatmul.mubr.f32.gmra.mrb[0].mxu0 %v301
        %v378 = vpop.f32.mrb[0].mxu0
        %v379 = vadd.f32 %v282, %v378
        %v380 = vpop.f32.mrb[0].mxu0
        %381 = vmatprep.mubr.f32.mxu0 0.0
        %382 = vmatmul.mubr.f32.gmra.mrb[0].mxu0 %v304
        %v383 = vpop.f32.mrb[0].mxu0
        %v384 = vadd.f32 %v287, %v383
        %v385 = vpop.f32.mrb[0].mxu0
        %386 = vmatprep.mubr.f32.mxu0 0.0
        %387 = vmatmul.mubr.f32.gmra.mrb[0].mxu0 %v307
        %v388 = vpop.f32.mrb[0].mxu0
        %v389 = vadd.f32 %v292, %v388
        %v390 = vpop.f32.mrb[0].mxu0
        %391 = vmatprep.mubr.f32.mxu0 0.0
        %392 = vmatmul.mubr.f32.gmra.mrb[0].mxu0 %v310
        %v393 = vpop.f32.mrb[0].mxu0
        %v394 = vadd.f32 %v297, %v393
        %v395 = vpop.f32.mrb[0].mxu0
        %396 = vdwg.mxu0
        %v397 = vmax.f32 %v379, 0.0
        %v398 = vmax.f32 %v384, 0.0
        %v399 = vmax.f32 %v389, 0.0
        %v400 = vmax.f32 %v394, 0.0
        %v401 = vld [vmem:[%s3] sm:$0x1]
        %v402 = vld [vmem:[#allocation2] sm:$0x1]
        %404 = vset.pattern.permute.xlu0 0
        %405 = vperm.xlu0 %404, %v402
        %v406 = vpop.permute.xlu0 %405
        %v408 = vlaneseq
        %v409 = vshrl.u32 %v408, 7
        %v410 = vsub.s32 0, %v409
        %v411 = vrot.slane %v406, %v410
        %vm412 = vcmask 261120
        %v414 = vsel %vm412, %v401, 0
        %416 = vmatprep.subr.mxu0 0.0
        %417 = vmatpush1.msra.mxu0 %v397
        %418 = vmatprep.subr.mxu0 0.0
        %419 = vmatpush1.msra.mxu0 %v398
        %420 = vmatprep.subr.mxu0 0.0
        %421 = vmatpush1.msra.mxu0 %v399
        %422 = vmatprep.subr.mxu0 0.0
        %423 = vmatpush1.msra.mxu0 %v400
        %424 = vmatprep.subr.mxu0 0.0
        %425 = vmatpush1.msra.mxu0 0.0
        %426 = vmatprep.subr.mxu0 0.0
        %427 = vmatpush1.msra.mxu0 0.0
        %428 = vmatprep.subr.mxu0 0.0
        %429 = vmatpush1.msra.mxu0 0.0
        %430 = vmatprep.subr.mxu0 0.0
        %431 = vmatpush1.msra.mxu0 0.0
        %432 = vmatprep.subr.mxu0 0.0
        %433 = vmatpush1.msra.mxu0 0.0
        %434 = vmatprep.subr.mxu0 0.0
        %435 = vmatpush1.msra.mxu0 0.0
        %436 = vmatprep.subr.mxu0 0.0
        %437 = vmatpush1.msra.mxu0 0.0
        %438 = vmatprep.subr.mxu0 0.0
        %439 = vmatpush1.msra.mxu0 0.0
        %440 = vmatprep.subr.mxu0 0.0
        %441 = vmatpush1.msra.mxu0 0.0
        %442 = vmatprep.subr.mxu0 0.0
        %443 = vmatpush1.msra.mxu0 0.0
        %444 = vmatprep.subr.mxu0 0.0
        %445 = vmatpush1.msra.mxu0 0.0
        %446 = vmatprep.subr.mxu0 0.0
        %447 = vmatpush1.msra.mxu0 0.0
        %448 = vmatprep.subr.mxu0 0.0
        %449 = vmatpush1.msra.mxu0 0.0
        %450 = vmatprep.subr.mxu0 0.0
        %451 = vmatpush1.msra.mxu0 0.0
        %452 = vmatprep.subr.mxu0 0.0
        %453 = vmatpush1.msra.mxu0 0.0
        %454 = vmatprep.subr.mxu0 0.0
        %455 = vmatpush1.msra.mxu0 0.0
        %456 = vmatprep.subr.mxu0 0.0
        %457 = vmatpush1.msra.mxu0 0.0
        %458 = vmatprep.subr.mxu0 0.0
        %459 = vmatpush1.msra.mxu0 0.0
        %460 = vmatprep.subr.mxu0 0.0
        %461 = vmatpush1.msra.mxu0 0.0
        %462 = vmatprep.subr.mxu0 0.0
        %463 = vmatpush1.msra.mxu0 0.0
        %464 = vmatprep.subr.mxu0 0.0
        %465 = vmatpush1.msra.mxu0 0.0
        %466 = vmatprep.subr.mxu0 0.0
        %467 = vmatpush1.msra.mxu0 0.0
        %468 = vmatprep.subr.mxu0 0.0
        %469 = vmatpush1.msra.mxu0 0.0
        %470 = vmatprep.subr.mxu0 0.0
        %471 = vmatpush1.msra.mxu0 0.0
        %472 = vmatprep.subr.mxu0 0.0
        %473 = vmatpush1.msra.mxu0 0.0
        %474 = vmatprep.subr.mxu0 0.0
        %475 = vmatpush1.msra.mxu0 0.0
        %476 = vmatprep.subr.mxu0 0.0
        %477 = vmatpush1.msra.mxu0 0.0
        %478 = vmatprep.subr.mxu0 0.0
        %479 = vmatpush1.msra.mxu0 0.0
        %480 = vmatprep.mubr.f32.mxu0 0.0
        %481 = vmatmul.mubr.f32.gmra.mrb[0].mxu0 %v414
        %v482 = vpop.f32.mrb[0].mxu0
        %v483 = vadd.f32 %v411, %v482
        %v484 = vpop.f32.mrb[0].mxu0
        %485 = vdwg.mxu0
        %486 = vst [vmem:[%s255] sm:$0x1] %v483
        %s487 = sand.u32 %s160, 1
        %s488 = scalar_lea.sflag [#allocation4], %s487
        %s489 = sand.u32 %s160, 1
        %s490 = scalar_lea.vmem [#allocation3], %s489
        // Predicated region
        $region41: #{cbf_guide_forward.1} parent=39 // pred_check
          %p491 = pneg %p170
        $region42: #{cbf_guide_forward.1} parent=39 // pred_check_branch
          %493 = sbr.rel (%p491) target = $region44
        $region43: #{cbf_guide_forward.1} parent=39 // pred_region
          %s495 = ssub.s32 16, 16
          %496 = vsyncadd %s488, %s495
          %s497 = sadd.s32 %s26, %s25
          %s498 = smul.addr %s497, 16
          %s499 = scalar_lea.hbm %s5, %s498
          %s501 = sshll.u32 %s490, 4
          %s502 = int_to_ptr.vmem [resolvable:$true] %s501
          %504 = dma.vmem_to_hbm [thread:$0]  %s502, 16, %s499, %s488
        $region44: #{cbf_guide_forward.1} parent=39 // pred_fallthru
          _
      $region40: #{cbf_guide_forward.1} parent=5 // pred_fallthru
        _
      %p505 = scmp.le.s32.totalorder 2, %s16
      // Predicated region
      $region45: #{cbf_guide_forward.1} parent=5 // pred_check
        %p506 = pneg %p505
      $region46: #{cbf_guide_forward.1} parent=5 // pred_check_branch
        %508 = sbr.rel (%p506) target = $region48
      $region47: #{cbf_guide_forward.1} parent=5 // pred_region
        %s509 = ssub.s32 %s16, 2
        // Predicated region
        $region49: #{cbf_guide_forward.1} parent=47 // pred_check
          %p510 = pneg %p176
        $region50: #{cbf_guide_forward.1} parent=47 // pred_check_branch
          %512 = sbr.rel (%p510) target = $region52
        $region51: #{cbf_guide_forward.1} parent=47 // pred_region
          %s513 = sand.u32 %s161, 1
          %s514 = scalar_lea.sflag [#allocation4], %s513
          %s515 = sand.u32 %s161, 1
          %s516 = scalar_lea.vmem [#allocation3], %s515
          %517 = dma.done %s514, 16
        $region52: #{cbf_guide_forward.1} parent=47 // pred_fallthru
          _
      $region48: #{cbf_guide_forward.1} parent=5 // pred_fallthru
        _
    $region6: #{cbf_guide_forward.1} parent=1 // loop_footer
      %s20 = sadd.s32 1, %s16
    $region7: #{cbf_guide_forward.1} parent=1 // loop_footer_branch
      %15 = sbr.rel target = $region3
    $region8: #{cbf_guide_forward.1} parent=1 // loop_exit
      _
    %518 = vsyncpa [#allocation4], 1
    %s519 = scalar_lea.sflag [#allocation4], 1
    %520 = vsyncpa %s519, 1

</llo_original>
